<compile_context>
chip_gen: v7x
topology: tpu7x:2x2x1
jax: 0.10.0
libtpu: 0.0.40
codegen_flags: <defaults>
</compile_context>

<pallas_src>
import jax
import jax.numpy as jnp
from jax import lax
from jax.experimental import pallas as pl
from jax.experimental.pallas import tpu as pltpu


_SUB = 128      # inner compute sub-tile (rows): bounds f32 intermediates
_LN_EPS = 1e-5  # nn.LayerNorm default; also keeps rsqrt finite on padded rows


# ----------------------------- Pallas kernel ------------------------------ #

def _ffn_addnorm_kernel(x_ref, w1_ref, b1_ref, w2_ref, b2_ref, g_ref, beta_ref,
                        o_ref):
    """One row-tile of: LayerNorm(x + W2 @ relu(W1 @ x + b1) + b2)."""
    d_model = x_ref.shape[1]
    n_sub = x_ref.shape[0] // _SUB           # static: row_tile is a mult of 128
    inv_d = jnp.float32(1.0 / d_model)

    # Small per-feature vectors, loaded once per grid step.
    b1 = b1_ref[...].astype(jnp.float32)      # (1, d_fc)
    b2 = b2_ref[...].astype(jnp.float32)      # (1, d_model)
    g = g_ref[...].astype(jnp.float32)        # (1, d_model)
    beta = beta_ref[...].astype(jnp.float32)  # (1, d_model)

    def body(s, carry):
        r0 = pl.multiple_of(s * _SUB, _SUB)
        x_blk = x_ref[pl.ds(r0, _SUB), :]
        x_f32 = x_blk.astype(jnp.float32)      # residual / LN stats in f32
        x_bf = x_blk.astype(jnp.bfloat16)      # MXU operand

        # FFN: bf16 x bf16 -> f32 accumulate on the MXU.
        h = jnp.dot(x_bf, w1_ref[...], preferred_element_type=jnp.float32)
        h = jnp.maximum(h + b1, 0.0)
        y = jnp.dot(h.astype(jnp.bfloat16), w2_ref[...],
                    preferred_element_type=jnp.float32)

        # Residual (dropout = identity in eval mode), all f32.
        r = x_f32 + y + b2

        # One-pass LayerNorm stats: two independent XLU reductions.
        s1 = jnp.sum(r, axis=-1, keepdims=True)
        s2 = jnp.sum(r * r, axis=-1, keepdims=True)
        mean = s1 * inv_d
        var = jnp.maximum(s2 * inv_d - mean * mean, 0.0)
        inv = lax.rsqrt(var + _LN_EPS)
        out = (r - mean) * (inv * g) + beta

        # Tail-block note: rows beyond n in the clipped last grid step contain
        # arbitrary data, but every op above is row-independent and the masked
        # write-back below discards them.
        o_ref[pl.ds(r0, _SUB), :] = out.astype(o_ref.dtype)
        return carry

    lax.fori_loop(0, n_sub, body, 0, unroll=True)


# ------------------------------- wrapper ----------------------------------- #

def _pick_row_tile(n, requested):
    """128-aligned row tile, capped so the grid keeps >= 4 steps when n allows
    (keeps both v7x TensorCores busy and the DMA pipeline overlapped)."""
    cap = 128 * max(1, n // (4 * 128))
    rt = max(128, min(int(requested), cap))
    return (rt // 128) * 128


def ffn_addnorm(x2d, w1, b1, w2, b2, gamma, beta, *, row_tile=512,
                out_dtype=jnp.bfloat16):
    """x2d: [N, d_model] flattened tokens. Returns [N, d_model] in out_dtype.

    No padding / slicing around the kernel: the partial tail block (if any) is
    clipped by Pallas (padded reads, masked writes).
    """
    n, d_model = x2d.shape
    d_fc = w1.shape[1]

    rt = _pick_row_tile(n, row_tile)
    grid = (pl.cdiv(n, rt),)

    cost = pl.CostEstimate(
        flops=int(4 * n * d_model * d_fc + 10 * n * d_model),
        transcendentals=int(n),                      # one rsqrt per row
        bytes_accessed=int(
            n * d_model * (x2d.dtype.itemsize + jnp.dtype(out_dtype).itemsize)
            + (w1.size + w2.size) * 2                # bf16 weights
            + (b1.size + b2.size + gamma.size + beta.size) * 4),
    )

    out = pl.pallas_call(
        _ffn_addnorm_kernel,
        out_shape=jax.ShapeDtypeStruct((n, d_model), out_dtype),
        grid=grid,
        in_specs=[
            pl.BlockSpec((rt, d_model), lambda i: (i, 0)),        # x tile
            # Constant-index parameter blocks: fetched once, revisited.
            pl.BlockSpec((d_model, d_fc), lambda i: (0, 0)),      # W1 (bf16)
            pl.BlockSpec((1, d_fc), lambda i: (0, 0)),            # b1
            pl.BlockSpec((d_fc, d_model), lambda i: (0, 0)),      # W2 (bf16)
            pl.BlockSpec((1, d_model), lambda i: (0, 0)),         # b2
            pl.BlockSpec((1, d_model), lambda i: (0, 0)),         # gamma
            pl.BlockSpec((1, d_model), lambda i: (0, 0)),         # beta
        ],
        out_specs=pl.BlockSpec((rt, d_model), lambda i: (i, 0)),
        compiler_params=pltpu.CompilerParams(
            dimension_semantics=("parallel",)),
        cost_estimate=cost,
    )(x2d, w1, b1, w2, b2, gamma, beta)

    return out


# ------------------------------- AddNorm ----------------------------------- #

class AddNormPallas:
    """JAX/Pallas port of AddNorm(d_model, block=FFN(d_model, d_fc), dropout).

    Dropout is identity (eval mode). FFN weights are stored in bf16 (MXU
    operand dtype); biases and LayerNorm params stay f32. Activations flow in
    the network's dtype (bf16 here), statistics/accumulation in f32,
    output in bf16.
    """

    def __init__(self, d_model=128, d_fc=256, key=jax.random.PRNGKey(0)):
        k1, k2 = jax.random.split(key, 2)
        scale1 = 1.0 / jnp.sqrt(d_model)
        scale2 = 1.0 / jnp.sqrt(d_fc)
        # FFN block parameters (nn.Linear: W stored as [in, out] for x @ W)
        self.w1 = (jax.random.normal(k1, (d_model, d_fc), jnp.float32)
                   * scale1).astype(jnp.bfloat16)
        self.b1 = jnp.zeros((1, d_fc), jnp.float32)
        self.w2 = (jax.random.normal(k2, (d_fc, d_model), jnp.float32)
                   * scale2).astype(jnp.bfloat16)
        self.b2 = jnp.zeros((1, d_model), jnp.float32)
        # LayerNorm(d_model)
        self.gamma = jnp.ones((1, d_model), jnp.float32)
        self.beta = jnp.zeros((1, d_model), jnp.float32)
        self.d_model = d_model

    def __call__(self, x, row_tile=512):
        bs, seq, d_model = x.shape
        assert d_model == self.d_model
        x2d = x.reshape(bs * seq, d_model)
        out2d = ffn_addnorm(x2d, self.w1, self.b1, self.w2, self.b2,
                            self.gamma, self.beta, row_tile=row_tile)
        return out2d.reshape(bs, seq, d_model)


# ----------------------------- reference (jnp) ----------------------------- #

def _reference(layer, x):
    """Pure-jnp reference mirroring the kernel's bf16-operand / f32-accumulate
    math (f32 result; kernel output is additionally rounded to bf16)."""
    bs, seq, d = x.shape
    x2d = x.reshape(bs * seq, d)
    x_f32 = x2d.astype(jnp.float32)
    x_bf = x2d.astype(jnp.bfloat16).astype(jnp.float32)
    w1 = layer.w1.astype(jnp.float32)
    w2 = layer.w2.astype(jnp.float32)
    h = jnp.maximum(x_bf @ w1 + layer.b1, 0.0)
    y = h.astype(jnp.bfloat16).astype(jnp.float32) @ w2 + layer.b2
    r = x_f32 + y
    mean = r.mean(-1, keepdims=True)
    var = ((r - mean) ** 2).mean(-1, keepdims=True)
    out = (r - mean) / jnp.sqrt(var + _LN_EPS) * layer.gamma + layer.beta
    return out.reshape(bs, seq, d)


# --------------------------------- main ------------------------------------ #

if __name__ == "__main__":
    key = jax.random.PRNGKey(0)
    k_x, k_param = jax.random.split(key, 2)

    bs = 2
    seq = 200            # bs*seq = 400 rows -> 4 grid steps at 128-row tiles,
    d_model = 128        # last block partial (clipped by Pallas, no padding).
    d_fc = 256

    # Activations in bf16 (network activation dtype): halves HBM read bytes.
    x = jax.random.normal(k_x, (bs, seq, d_model), jnp.float32).astype(
        jnp.bfloat16)

    layer = AddNormPallas(d_model=d_model, d_fc=d_fc, key=k_param)

    out = layer(x)
    out = jax.block_until_ready(out)

    ref = _reference(layer, x)
    assert out.shape == (bs, seq, d_model)
    assert out.dtype == jnp.bfloat16
    err = jnp.max(jnp.abs(out.astype(jnp.float32) - ref))
    assert jnp.allclose(out.astype(jnp.float32), ref, atol=3e-2, rtol=3e-2), \
        float(err)

    print("KERNEL_OK")
</pallas_src>

<mosaic_0001>
module attributes {stable_mosaic.version = 11 : i64} {
  func.func @_ffn_addnorm_kernel(%arg0: i32, %arg1: memref<128x128xbf16, #tpu.memory_space<vmem>>, %arg2: memref<128x256xbf16, #tpu.memory_space<vmem>>, %arg3: memref<1x256xf32, #tpu.memory_space<vmem>>, %arg4: memref<256x128xbf16, #tpu.memory_space<vmem>>, %arg5: memref<1x128xf32, #tpu.memory_space<vmem>>, %arg6: memref<1x128xf32, #tpu.memory_space<vmem>>, %arg7: memref<1x128xf32, #tpu.memory_space<vmem>>, %arg8: memref<128x128xbf16, #tpu.memory_space<vmem>>) attributes {dimension_semantics = [#tpu.dimension_semantics<parallel>], iteration_bounds = array<i64: 4>, scalar_prefetch = 0 : i64, scratch_operands = 0 : i64, tpu.core_type = #tpu.core_type<tc>, window_params = [{transform_indices = @transform_0, window_bounds = array<i64: 128, 128>}, {pipeline_mode = #tpu.pipeline_mode<synchronous>, transform_indices = @transform_1, window_bounds = array<i64: 128, 256>}, {pipeline_mode = #tpu.pipeline_mode<synchronous>, transform_indices = @transform_2, window_bounds = array<i64: 1, 256>}, {pipeline_mode = #tpu.pipeline_mode<synchronous>, transform_indices = @transform_3, window_bounds = array<i64: 256, 128>}, {pipeline_mode = #tpu.pipeline_mode<synchronous>, transform_indices = @transform_4, window_bounds = array<i64: 1, 128>}, {pipeline_mode = #tpu.pipeline_mode<synchronous>, transform_indices = @transform_5, window_bounds = array<i64: 1, 128>}, {pipeline_mode = #tpu.pipeline_mode<synchronous>, transform_indices = @transform_6, window_bounds = array<i64: 1, 128>}, {transform_indices = @transform_7, window_bounds = array<i64: 128, 128>}]} {
    %c0 = arith.constant 0 : index
    %c0_0 = arith.constant 0 : index
    %0 = vector.load %arg3[%c0, %c0_0] : memref<1x256xf32, #tpu.memory_space<vmem>>, vector<1x256xf32>
    %c0_1 = arith.constant 0 : index
    %c0_2 = arith.constant 0 : index
    %1 = vector.load %arg5[%c0_1, %c0_2] : memref<1x128xf32, #tpu.memory_space<vmem>>, vector<1x128xf32>
    %c0_3 = arith.constant 0 : index
    %c0_4 = arith.constant 0 : index
    %2 = vector.load %arg6[%c0_3, %c0_4] : memref<1x128xf32, #tpu.memory_space<vmem>>, vector<1x128xf32>
    %c0_5 = arith.constant 0 : index
    %c0_6 = arith.constant 0 : index
    %3 = vector.load %arg7[%c0_5, %c0_6] : memref<1x128xf32, #tpu.memory_space<vmem>>, vector<1x128xf32>
    %cst = arith.constant 7.812500e-03 : f32
    %c0_i32 = arith.constant 0 : i32
    %c128_i32 = arith.constant 128 : i32
    %4 = arith.muli %c0_i32, %c128_i32 : i32
    %5 = tpu.assume_multiple %4, 128 : i32
    %6 = arith.index_cast %5 : i32 to index
    %c0_7 = arith.constant 0 : index
    %7 = vector.load %arg1[%6, %c0_7] : memref<128x128xbf16, #tpu.memory_space<vmem>>, vector<128x128xbf16>
    %8 = arith.extf %7 : vector<128x128xbf16> to vector<128x128xf32>
    %c0_8 = arith.constant 0 : index
    %c0_9 = arith.constant 0 : index
    %9 = vector.load %arg2[%c0_8, %c0_9] : memref<128x256xbf16, #tpu.memory_space<vmem>>, vector<128x256xbf16>
    %cst_10 = arith.constant dense<0.000000e+00> : vector<128x256xf32>
    %10 = tpu.matmul %7, %9, %cst_10 {dimension_numbers = #tpu.dot_dimension_numbers<[1], [0], [0], [1], [0, 0, 1, 1], [], []>} : vector<128x128xbf16>, vector<128x256xbf16>, vector<128x256xf32> -> vector<128x256xf32>
    %11 = vector.broadcast %0 : vector<1x256xf32> to vector<128x256xf32>
    %12 = arith.addf %10, %11 : vector<128x256xf32>
    %cst_11 = arith.constant 0.000000e+00 : f32
    %13 = vector.broadcast %cst_11 : f32 to vector<128x256xf32>
    %14 = arith.maximumf %12, %13 : vector<128x256xf32>
    %15 = arith.truncf %14 : vector<128x256xf32> to vector<128x256xbf16>
    %c0_12 = arith.constant 0 : index
    %c0_13 = arith.constant 0 : index
    %16 = vector.load %arg4[%c0_12, %c0_13] : memref<256x128xbf16, #tpu.memory_space<vmem>>, vector<256x128xbf16>
    %cst_14 = arith.constant dense<0.000000e+00> : vector<128x128xf32>
    %17 = tpu.matmul %15, %16, %cst_14 {dimension_numbers = #tpu.dot_dimension_numbers<[1], [0], [0], [1], [0, 0, 1, 1], [], []>} : vector<128x256xbf16>, vector<256x128xbf16>, vector<128x128xf32> -> vector<128x128xf32>
    %18 = arith.addf %8, %17 : vector<128x128xf32>
    %19 = vector.broadcast %1 : vector<1x128xf32> to vector<128x128xf32>
    %20 = arith.addf %18, %19 : vector<128x128xf32>
    %cst_15 = arith.constant dense<0.000000e+00> : vector<128xf32>
    %21 = vector.multi_reduction <add>, %20, %cst_15 [1] : vector<128x128xf32> to vector<128xf32>
    %22 = vector.shape_cast %21 : vector<128xf32> to vector<128x1xf32>
    %23 = arith.mulf %20, %20 : vector<128x128xf32>
    %cst_16 = arith.constant dense<0.000000e+00> : vector<128xf32>
    %24 = vector.multi_reduction <add>, %23, %cst_16 [1] : vector<128x128xf32> to vector<128xf32>
    %25 = vector.shape_cast %24 : vector<128xf32> to vector<128x1xf32>
    %26 = vector.broadcast %cst : f32 to vector<128x1xf32>
    %27 = arith.mulf %22, %26 : vector<128x1xf32>
    %28 = vector.broadcast %cst : f32 to vector<128x1xf32>
    %29 = arith.mulf %25, %28 : vector<128x1xf32>
    %30 = arith.mulf %27, %27 : vector<128x1xf32>
    %31 = arith.subf %29, %30 : vector<128x1xf32>
    %cst_17 = arith.constant 0.000000e+00 : f32
    %32 = vector.broadcast %cst_17 : f32 to vector<128x1xf32>
    %33 = arith.maximumf %31, %32 : vector<128x1xf32>
    %cst_18 = arith.constant 9.99999974E-6 : f32
    %34 = vector.broadcast %cst_18 : f32 to vector<128x1xf32>
    %35 = arith.addf %33, %34 : vector<128x1xf32>
    %36 = math.rsqrt %35 : vector<128x1xf32>
    %37 = vector.broadcast %27 : vector<128x1xf32> to vector<128x128xf32>
    %38 = arith.subf %20, %37 : vector<128x128xf32>
    %39 = vector.broadcast %36 : vector<128x1xf32> to vector<128x128xf32>
    %40 = vector.broadcast %2 : vector<1x128xf32> to vector<128x128xf32>
    %41 = arith.mulf %39, %40 : vector<128x128xf32>
    %42 = arith.mulf %38, %41 : vector<128x128xf32>
    %43 = vector.broadcast %3 : vector<1x128xf32> to vector<128x128xf32>
    %44 = arith.addf %42, %43 : vector<128x128xf32>
    %45 = arith.truncf %44 : vector<128x128xf32> to vector<128x128xbf16>
    %46 = arith.index_cast %5 : i32 to index
    %c0_19 = arith.constant 0 : index
    %47 = vector.load %arg8[%46, %c0_19] : memref<128x128xbf16, #tpu.memory_space<vmem>>, vector<128x128xbf16>
    tpu.vector_store %arg8[%46, %c0_19], %45 {strides = array<i32>} : memref<128x128xbf16, #tpu.memory_space<vmem>>, vector<128x128xbf16>,
    %c1_i32 = arith.constant 1 : i32
    return
  }
  func.func @transform_0(%arg0: i32) -> (i32, i32) {
    %c0_i32 = arith.constant 0 : i32
    %c0_i32_0 = arith.constant 0 : i32
    return %arg0, %c0_i32 : i32, i32
  }
  func.func @transform_1(%arg0: i32) -> (i32, i32) {
    %c0_i32 = arith.constant 0 : i32
    %c0_i32_0 = arith.constant 0 : i32
    %c0_i32_1 = arith.constant 0 : i32
    return %c0_i32, %c0_i32_0 : i32, i32
  }
  func.func @transform_2(%arg0: i32) -> (i32, i32) {
    %c0_i32 = arith.constant 0 : i32
    %c0_i32_0 = arith.constant 0 : i32
    %c0_i32_1 = arith.constant 0 : i32
    return %c0_i32, %c0_i32_0 : i32, i32
  }
  func.func @transform_3(%arg0: i32) -> (i32, i32) {
    %c0_i32 = arith.constant 0 : i32
    %c0_i32_0 = arith.constant 0 : i32
    %c0_i32_1 = arith.constant 0 : i32
    return %c0_i32, %c0_i32_0 : i32, i32
  }
  func.func @transform_4(%arg0: i32) -> (i32, i32) {
    %c0_i32 = arith.constant 0 : i32
    %c0_i32_0 = arith.constant 0 : i32
    %c0_i32_1 = arith.constant 0 : i32
    return %c0_i32, %c0_i32_0 : i32, i32
  }
  func.func @transform_5(%arg0: i32) -> (i32, i32) {
    %c0_i32 = arith.constant 0 : i32
    %c0_i32_0 = arith.constant 0 : i32
    %c0_i32_1 = arith.constant 0 : i32
    return %c0_i32, %c0_i32_0 : i32, i32
  }
  func.func @transform_6(%arg0: i32) -> (i32, i32) {
    %c0_i32 = arith.constant 0 : i32
    %c0_i32_0 = arith.constant 0 : i32
    %c0_i32_1 = arith.constant 0 : i32
    return %c0_i32, %c0_i32_0 : i32, i32
  }
  func.func @transform_7(%arg0: i32) -> (i32, i32) {
    %c0_i32 = arith.constant 0 : i32
    %c0_i32_0 = arith.constant 0 : i32
    return %arg0, %c0_i32 : i32, i32
  }
}

</mosaic_0001>

<llo_original>
// kernel: tpu_custom_call.1
$region0: #{tpu_custom_call.1}
  #allocation0 [shape = 'u32[]', space=smem, size = 0x4, offset = 0x4, fixed_abs, tag = 'smem constant byte address 0x4 - core index']
  #allocation1 [shape = 'u32[144,128]{1,0:T(1,128)}', space=vmem, size = 0x12000, scoped, tag = 'internal scratch']
  %s0 = inlined_call_operand.hbm [shape: bf16[400,128], index: 0, kind: input, shape index: {}]
  %s1 = inlined_call_operand.hbm [shape: bf16[128,256], index: 1, kind: input, shape index: {}]
  %s2 = inlined_call_operand.vmem [shape: f32[1,256], index: 2, kind: input, shape index: {}]
  %s3 = inlined_call_operand.hbm [shape: bf16[256,128], index: 3, kind: input, shape index: {}]
  %s4 = inlined_call_operand.vmem [shape: f32[1,128], index: 4, kind: input, shape index: {}]
  %s5 = inlined_call_operand.vmem [shape: f32[1,128], index: 5, kind: input, shape index: {}]
  %s6 = inlined_call_operand.vmem [shape: f32[1,128], index: 6, kind: input, shape index: {}]
  %s7 = inlined_call_operand.hbm [shape: bf16[400,128], index: 7, kind: output, shape index: {}]
  %s8 = sld [smem:[#allocation0]]
  $region73: #{tpu_custom_call.1} parent=0
    _
  %s10 = ssub.s32 1, %s8
  %s11 = scalar_select 0, %s10, %s8
  $region1: #{tpu_custom_call.1} parent=0
    #allocation2 [shape = 'u8[65536]{0}', space=vmem, size = 0x10000, scoped, tag = 'input window, operand 0']
    #allocation3 [shape = 's32[2]{0}', space=sflag, size = 0x8, scoped, tag = 'scoped memory for tpu_custom_call.1']
    #allocation4 [shape = 's32[2]{0}', space=sflag, size = 0x8, scoped, tag = 'scoped memory for tpu_custom_call.1']
    #allocation5 [shape = 'u8[65536]{0}', space=vmem, size = 0x10000, scoped, tag = 'input window, operand 1, single buffered']
    #allocation6 [shape = 's32[1]{0}', space=sflag, size = 0x4, scoped, tag = 'scoped memory for tpu_custom_call.1']
    #allocation7 [shape = 'u8[65536]{0}', space=vmem, size = 0x10000, scoped, tag = 'input window, operand 3, single buffered']
    #allocation8 [shape = 'u8[65536]{0}', space=vmem, size = 0x10000, scoped, tag = 'output window, operand 0']
    %12 = vsyncpa [#allocation3], 0
    %s13 = scalar_lea.sflag [#allocation3], 1
    %14 = vsyncpa %s13, 0
    %15 = vsyncpa [#allocation6], 0
    %16 = vsyncpa [#allocation4], 0
    %s17 = scalar_lea.sflag [#allocation4], 1
    %18 = vsyncpa %s17, 0
    loop: start=0, step=1, limit=6
    $region2: #{tpu_custom_call.1} parent=1 // loop_pre_header
      _
    $region3: #{tpu_custom_call.1} parent=1 // loop_header
      %s20 = sphi 0, %s24
      %p21 = scmp.ge.s32.totalorder %s20, 6
      %s30 = sphi 0, %s32
      %s33 = sphi 0, %s30
      %s34 = sphi 0, %s33
      %s50 = sphi 0, %s34
      %s54 = sphi 0, %s54
      %s56 = sphi 0, %s54
      %s57 = sphi 0, %s56
      %s71 = sphi 0, %s57
      %s75 = sphi 0, %s75
      %s77 = sphi 0, %s75
      %s78 = sphi 0, %s77
      %s92 = sphi 0, %s78
      %s96 = sphi 0, %s96
      %s98 = sphi 0, %s96
      %s99 = sphi 0, %s98
      %s113 = sphi 0, %s99
      %s117 = sphi 0, %s117
      %s119 = sphi 0, %s117
      %s120 = sphi 0, %s119
      %s134 = sphi 0, %s120
      %s138 = sphi 0, %s138
      %s140 = sphi 0, %s138
      %s141 = sphi 0, %s140
      %s155 = sphi 0, %s141
      %s159 = sphi 0, %s159
      %s161 = sphi 0, %s159
      %s162 = sphi 0, %s161
      %s176 = sphi 0, %s162
      %s182 = sphi 0, %s184
      %s185 = sphi 0, %s182
      %s186 = sphi 0, %s185
      %s202 = sphi 0, %s186
    $region4: #{tpu_custom_call.1} parent=1 // loop_header_branch
      %23 = sbr.rel (%p21) target = $region8
    $region5: #{tpu_custom_call.1} parent=1 // loop_body
      %s25 = ssub.s32 %s20, 1
      %s26 = ssub.s32 %s20, 2
      %s27 = sadd.s32 %s20, 1
      %s28 = ssub.s32 %s20, %s27
      %p29 = scmp.eq.s32.totalorder %s28, 0
      %s31 = sadd.s32 %s30, 1
      %s32 = scalar_select %p29, %s30, %s31
      %p35 = pneg %p29
      %p36 = scmp.eq.s32.totalorder %s20, 3
      %p37 = por %p35, %p36
      %p38 = scmp.ne.s32.totalorder %s30, %s33
      %p39 = scmp.eq.s32.totalorder %s20, 0
      %p40 = por %p38, %p39
      %p41 = scmp.ne.s32.totalorder %s30, %s33
      %p42 = scmp.eq.s32.totalorder %s25, 3
      %p43 = por %p41, %p42
      %p44 = scmp.ne.s32.totalorder %s33, %s34
      %p45 = scmp.eq.s32.totalorder %s25, 0
      %p46 = por %p44, %p45
      %p47 = scmp.ne.s32.totalorder %s33, %s34
      %p48 = scmp.eq.s32.totalorder %s26, 3
      %p49 = por %p47, %p48
      %p51 = scmp.ne.s32.totalorder %s34, %s50
      %p52 = scmp.eq.s32.totalorder %s26, 0
      %p53 = por %p51, %p52
      %s55 = sadd.s32 %s54, 1
      %p58 = scmp.eq.s32.totalorder %s20, 3
      %p59 = scmp.ne.s32.totalorder %s54, %s56
      %p60 = scmp.eq.s32.totalorder %s20, 0
      %p61 = por %p59, %p60
      %p62 = scmp.ne.s32.totalorder %s54, %s56
      %p63 = scmp.eq.s32.totalorder %s25, 3
      %p64 = por %p62, %p63
      %p65 = scmp.ne.s32.totalorder %s56, %s57
      %p66 = scmp.eq.s32.totalorder %s25, 0
      %p67 = por %p65, %p66
      %p68 = scmp.ne.s32.totalorder %s56, %s57
      %p69 = scmp.eq.s32.totalorder %s26, 3
      %p70 = por %p68, %p69
      %p72 = scmp.ne.s32.totalorder %s57, %s71
      %p73 = scmp.eq.s32.totalorder %s26, 0
      %p74 = por %p72, %p73
      %s76 = sadd.s32 %s75, 1
      %p79 = scmp.eq.s32.totalorder %s20, 3
      %p80 = scmp.ne.s32.totalorder %s75, %s77
      %p81 = scmp.eq.s32.totalorder %s20, 0
      %p82 = por %p80, %p81
      %p83 = scmp.ne.s32.totalorder %s75, %s77
      %p84 = scmp.eq.s32.totalorder %s25, 3
      %p85 = por %p83, %p84
      %p86 = scmp.ne.s32.totalorder %s77, %s78
      %p87 = scmp.eq.s32.totalorder %s25, 0
      %p88 = por %p86, %p87
      %p89 = scmp.ne.s32.totalorder %s77, %s78
      %p90 = scmp.eq.s32.totalorder %s26, 3
      %p91 = por %p89, %p90
      %p93 = scmp.ne.s32.totalorder %s78, %s92
      %p94 = scmp.eq.s32.totalorder %s26, 0
      %p95 = por %p93, %p94
      %s97 = sadd.s32 %s96, 1
      %p100 = scmp.eq.s32.totalorder %s20, 3
      %p101 = scmp.ne.s32.totalorder %s96, %s98
      %p102 = scmp.eq.s32.totalorder %s20, 0
      %p103 = por %p101, %p102
      %p104 = scmp.ne.s32.totalorder %s96, %s98
      %p105 = scmp.eq.s32.totalorder %s25, 3
      %p106 = por %p104, %p105
      %p107 = scmp.ne.s32.totalorder %s98, %s99
      %p108 = scmp.eq.s32.totalorder %s25, 0
      %p109 = por %p107, %p108
      %p110 = scmp.ne.s32.totalorder %s98, %s99
      %p111 = scmp.eq.s32.totalorder %s26, 3
      %p112 = por %p110, %p111
      %p114 = scmp.ne.s32.totalorder %s99, %s113
      %p115 = scmp.eq.s32.totalorder %s26, 0
      %p116 = por %p114, %p115
      %s118 = sadd.s32 %s117, 1
      %p121 = scmp.eq.s32.totalorder %s20, 3
      %p122 = scmp.ne.s32.totalorder %s117, %s119
      %p123 = scmp.eq.s32.totalorder %s20, 0
      %p124 = por %p122, %p123
      %p125 = scmp.ne.s32.totalorder %s117, %s119
      %p126 = scmp.eq.s32.totalorder %s25, 3
      %p127 = por %p125, %p126
      %p128 = scmp.ne.s32.totalorder %s119, %s120
      %p129 = scmp.eq.s32.totalorder %s25, 0
      %p130 = por %p128, %p129
      %p131 = scmp.ne.s32.totalorder %s119, %s120
      %p132 = scmp.eq.s32.totalorder %s26, 3
      %p133 = por %p131, %p132
      %p135 = scmp.ne.s32.totalorder %s120, %s134
      %p136 = scmp.eq.s32.totalorder %s26, 0
      %p137 = por %p135, %p136
      %s139 = sadd.s32 %s138, 1
      %p142 = scmp.eq.s32.totalorder %s20, 3
      %p143 = scmp.ne.s32.totalorder %s138, %s140
      %p144 = scmp.eq.s32.totalorder %s20, 0
      %p145 = por %p143, %p144
      %p146 = scmp.ne.s32.totalorder %s138, %s140
      %p147 = scmp.eq.s32.totalorder %s25, 3
      %p148 = por %p146, %p147
      %p149 = scmp.ne.s32.totalorder %s140, %s141
      %p150 = scmp.eq.s32.totalorder %s25, 0
      %p151 = por %p149, %p150
      %p152 = scmp.ne.s32.totalorder %s140, %s141
      %p153 = scmp.eq.s32.totalorder %s26, 3
      %p154 = por %p152, %p153
      %p156 = scmp.ne.s32.totalorder %s141, %s155
      %p157 = scmp.eq.s32.totalorder %s26, 0
      %p158 = por %p156, %p157
      %s160 = sadd.s32 %s159, 1
      %p163 = scmp.eq.s32.totalorder %s20, 3
      %p164 = scmp.ne.s32.totalorder %s159, %s161
      %p165 = scmp.eq.s32.totalorder %s20, 0
      %p166 = por %p164, %p165
      %p167 = scmp.ne.s32.totalorder %s159, %s161
      %p168 = scmp.eq.s32.totalorder %s25, 3
      %p169 = por %p167, %p168
      %p170 = scmp.ne.s32.totalorder %s161, %s162
      %p171 = scmp.eq.s32.totalorder %s25, 0
      %p172 = por %p170, %p171
      %p173 = scmp.ne.s32.totalorder %s161, %s162
      %p174 = scmp.eq.s32.totalorder %s26, 3
      %p175 = por %p173, %p174
      %p177 = scmp.ne.s32.totalorder %s162, %s176
      %p178 = scmp.eq.s32.totalorder %s26, 0
      %p179 = por %p177, %p178
      %s180 = ssub.s32 %s20, %s27
      %p181 = scmp.eq.s32.totalorder %s180, 0
      %s183 = sadd.s32 %s182, 1
      %s184 = scalar_select %p181, %s182, %s183
      %p187 = pneg %p181
      %p188 = scmp.eq.s32.totalorder %s20, 3
      %p189 = por %p187, %p188
      %p190 = scmp.ne.s32.totalorder %s182, %s185
      %p191 = scmp.eq.s32.totalorder %s20, 0
      %p192 = por %p190, %p191
      %p193 = scmp.ne.s32.totalorder %s182, %s185
      %p194 = scmp.eq.s32.totalorder %s25, 3
      %p195 = por %p193, %p194
      %p196 = scmp.ne.s32.totalorder %s185, %s186
      %p197 = scmp.eq.s32.totalorder %s25, 0
      %p198 = por %p196, %p197
      %p199 = scmp.ne.s32.totalorder %s185, %s186
      %p200 = scmp.eq.s32.totalorder %s26, 3
      %p201 = por %p199, %p200
      %p203 = scmp.ne.s32.totalorder %s186, %s202
      %p204 = scmp.eq.s32.totalorder %s26, 0
      %p205 = por %p203, %p204
      %p206 = scmp.le.s32.totalorder 1, %s20
      %p207 = scmp.lt.s32.totalorder %s20, 5
      %p208 = pnand %p206, %p207
      %p209 = pneg %p208
      // Predicated region
      $region9: #{tpu_custom_call.1} parent=5 // pred_check
        _
      $region10: #{tpu_custom_call.1} parent=5 // pred_check_branch
        %211 = sbr.rel (%p208) target = $region12
      $region11: #{tpu_custom_call.1} parent=5 // pred_region
        %s212 = ssub.s32 %s20, 1
        // Predicated region
        $region13: #{tpu_custom_call.1} parent=11 // pred_check
          %p213 = pneg %p67
        $region14: #{tpu_custom_call.1} parent=11 // pred_check_branch
          %215 = sbr.rel (%p213) target = $region16
        $region15: #{tpu_custom_call.1} parent=11 // pred_region
          %s217 = ssub.s32 2048, 2048
          %218 = vsyncadd [#allocation6], %s217
          %s219 = sshll.u32 [#allocation5], 4
          %s220 = int_to_ptr.vmem [resolvable:$true] %s219
          %225 = dma.hbm_to_vmem [thread:$0]  %s1, 2048, %s220, [#allocation6], 128, 128, 8
        $region16: #{tpu_custom_call.1} parent=11 // pred_fallthru
          _
        // Predicated region
        $region17: #{tpu_custom_call.1} parent=11 // pred_check
          %p226 = pneg %p88
        $region18: #{tpu_custom_call.1} parent=11 // pred_check_branch
          %228 = sbr.rel (%p226) target = $region20
        $region19: #{tpu_custom_call.1} parent=11 // pred_region
          _
        $region20: #{tpu_custom_call.1} parent=11 // pred_fallthru
          _
        // Predicated region
        $region21: #{tpu_custom_call.1} parent=11 // pred_check
          %p229 = pneg %p109
        $region22: #{tpu_custom_call.1} parent=11 // pred_check_branch
          %231 = sbr.rel (%p229) target = $region24
        $region23: #{tpu_custom_call.1} parent=11 // pred_region
          %s233 = ssub.s32 2048, 2048
          %234 = vsyncadd [#allocation6], %s233
          %s235 = sshll.u32 [#allocation7], 4
          %s236 = int_to_ptr.vmem [resolvable:$true] %s235
          %241 = dma.hbm_to_vmem [thread:$0]  %s3, 2048, %s236, [#allocation6], 64, 64, 4
        $region24: #{tpu_custom_call.1} parent=11 // pred_fallthru
          _
        // Predicated region
        $region25: #{tpu_custom_call.1} parent=11 // pred_check
          %p242 = pneg %p130
        $region26: #{tpu_custom_call.1} parent=11 // pred_check_branch
          %244 = sbr.rel (%p242) target = $region28
        $region27: #{tpu_custom_call.1} parent=11 // pred_region
          _
        $region28: #{tpu_custom_call.1} parent=11 // pred_fallthru
          _
        // Predicated region
        $region29: #{tpu_custom_call.1} parent=11 // pred_check
          %p245 = pneg %p151
        $region30: #{tpu_custom_call.1} parent=11 // pred_check_branch
          %247 = sbr.rel (%p245) target = $region32
        $region31: #{tpu_custom_call.1} parent=11 // pred_region
          _
        $region32: #{tpu_custom_call.1} parent=11 // pred_fallthru
          _
        // Predicated region
        $region33: #{tpu_custom_call.1} parent=11 // pred_check
          %p248 = pneg %p172
        $region34: #{tpu_custom_call.1} parent=11 // pred_check_branch
          %250 = sbr.rel (%p248) target = $region36
        $region35: #{tpu_custom_call.1} parent=11 // pred_region
          _
        $region36: #{tpu_custom_call.1} parent=11 // pred_fallthru
          _
      $region12: #{tpu_custom_call.1} parent=5 // pred_fallthru
        _
      %p251 = scmp.lt.s32.totalorder %s20, 4
      // Predicated region
      $region37: #{tpu_custom_call.1} parent=5 // pred_check
        %p252 = pneg %p251
      $region38: #{tpu_custom_call.1} parent=5 // pred_check_branch
        %254 = sbr.rel (%p252) target = $region40
      $region39: #{tpu_custom_call.1} parent=5 // pred_region
        // Predicated region
        $region41: #{tpu_custom_call.1} parent=39 // pred_check
          %p255 = pneg %p40
        $region42: #{tpu_custom_call.1} parent=39 // pred_check_branch
          %257 = sbr.rel (%p255) target = $region44
        $region43: #{tpu_custom_call.1} parent=39 // pred_region
          %s258 = sand.u32 %s30, 1
          %s259 = scalar_lea.sflag [#allocation3], %s258
          %s260 = sand.u32 %s30, 1
          %s261 = smul.addr %s260, 64
          %s262 = scalar_lea.vmem [#allocation2], %s261
          %s263 = smul.u32 16, %s20
          %s264 = ssub.s32 50, %s263
          %p265 = scmp.lt.s32.totalorder %s264, 16
          %s266 = scalar_select %p265, %s264, 16
          %s267 = smul.u32 64, %s266
          %s269 = ssub.s32 1024, %s267
          %270 = vsyncadd %s259, %s269
          %p271 = scmp.ne.s32.totalorder 0, %s267
          %s272 = smul.addr %s263, 64
          %s273 = scalar_lea.hbm %s0, %s272
          %s274 = smul.u32 4, %s266
          %s275 = sshll.u32 %s262, 4
          %s276 = int_to_ptr.vmem [resolvable:$true] %s275
          %s277 = sshll.u32 %s274, 4
          %281 = dma.hbm_to_vmem [thread:$0]  (%p271), %s273, %s277, %s276, %s259, 64, 64, 4
        $region44: #{tpu_custom_call.1} parent=39 // pred_fallthru
          _
      $region40: #{tpu_custom_call.1} parent=5 // pred_fallthru
        _
      %p282 = scmp.le.s32.totalorder 1, %s20
      %p283 = scmp.lt.s32.totalorder %s20, 5
      %p284 = pnand %p282, %p283
      %p285 = pneg %p284
      // Predicated region
      $region45: #{tpu_custom_call.1} parent=5 // pred_check
        _
      $region46: #{tpu_custom_call.1} parent=5 // pred_check_branch
        %287 = sbr.rel (%p284) target = $region48
      $region47: #{tpu_custom_call.1} parent=5 // pred_region
        %s288 = ssub.s32 %s20, 1
        %s289 = sand.u32 %s33, 1
        %s290 = scalar_lea.sflag [#allocation3], %s289
        %s291 = sand.u32 %s33, 1
        %s292 = smul.addr %s291, 64
        %s293 = scalar_lea.vmem [#allocation2], %s292
        // Predicated region
        $region49: #{tpu_custom_call.1} parent=47 // pred_check
          %p294 = pneg %p46
        $region50: #{tpu_custom_call.1} parent=47 // pred_check_branch
          %296 = sbr.rel (%p294) target = $region52
        $region51: #{tpu_custom_call.1} parent=47 // pred_region
          %297 = dma.done %s290, 1024
        $region52: #{tpu_custom_call.1} parent=47 // pred_fallthru
          _
        // Predicated region
        $region53: #{tpu_custom_call.1} parent=47 // pred_check
          %p298 = pneg %p67
        $region54: #{tpu_custom_call.1} parent=47 // pred_check_branch
          %300 = sbr.rel (%p298) target = $region56
        $region55: #{tpu_custom_call.1} parent=47 // pred_region
          %301 = dma.done [#allocation6], 2048
        $region56: #{tpu_custom_call.1} parent=47 // pred_fallthru
          _
        // Predicated region
        $region57: #{tpu_custom_call.1} parent=47 // pred_check
          %p302 = pneg %p109
        $region58: #{tpu_custom_call.1} parent=47 // pred_check_branch
          %304 = sbr.rel (%p302) target = $region60
        $region59: #{tpu_custom_call.1} parent=47 // pred_region
          %305 = dma.done [#allocation6], 2048
        $region60: #{tpu_custom_call.1} parent=47 // pred_fallthru
          _
        %s306 = sand.u32 %s33, 1
        %s307 = scalar_lea.sflag [#allocation3], %s306
        %s308 = sand.u32 %s33, 1
        %s309 = smul.addr %s308, 64
        %s310 = scalar_lea.vmem [#allocation2], %s309
        %p311 = pneg %p46
        %p312 = pneg %p43
        %p313 = pneg %p67
        %p314 = pneg %p64
        %p315 = pneg %p88
        %p316 = pneg %p85
        %p317 = pneg %p109
        %p318 = pneg %p106
        %p319 = pneg %p130
        %p320 = pneg %p127
        %p321 = pneg %p151
        %p322 = pneg %p148
        %p323 = pneg %p172
        %p324 = pneg %p169
        %p325 = pneg %p198
        %p326 = pneg %p195
        %s327 = sand.u32 %s185, 1
        %s328 = scalar_lea.sflag [#allocation4], %s327
        %s329 = sand.u32 %s185, 1
        %s330 = smul.addr %s329, 64
        %s331 = scalar_lea.vmem [#allocation8], %s330
        %s332 = smul.u32 16, %s25
        %s333 = ssub.s32 50, %s332
        %p334 = scmp.lt.s32.totalorder %s333, 16
        %s335 = scalar_select %p334, %s333, 16
        %s336 = smul.u32 64, %s335
        %s337 = smul.u32 16, %s25
        %s338 = ssub.s32 50, %s337
        %p339 = scmp.lt.s32.totalorder %s338, 16
        %s340 = scalar_select %p339, %s338, 16
        %s341 = smul.u32 64, %s340
        %v343 = vld [vmem:[%s2] sm:$0x3]
        %v344 = vld [vmem:[%s4] sm:$0x1]
        %v345 = vld [vmem:[%s5] sm:$0x1]
        %v346 = vld [vmem:[%s6] sm:$0x1]
        %v347 = vld [vmem:[%s293] sm:$0xf]
        %v348 = vld [vmem:[%s293 + $0x4] sm:$0xf]
        %v349 = vld [vmem:[%s293 + $0x8] sm:$0xf]
        %v350 = vld [vmem:[%s293 + $0xc] sm:$0xf]
        %v351 = vld [vmem:[%s293 + $0x10] sm:$0xf]
        %v352 = vld [vmem:[%s293 + $0x14] sm:$0xf]
        %v353 = vld [vmem:[%s293 + $0x18] sm:$0xf]
        %v354 = vld [vmem:[%s293 + $0x1c] sm:$0xf]
        %v355 = vld [vmem:[%s293 + $0x20] sm:$0xf]
        %v356 = vld [vmem:[%s293 + $0x24] sm:$0xf]
        %v357 = vld [vmem:[%s293 + $0x28] sm:$0xf]
        %v358 = vld [vmem:[%s293 + $0x2c] sm:$0xf]
        %v359 = vld [vmem:[%s293 + $0x30] sm:$0xf]
        %v360 = vld [vmem:[%s293 + $0x34] sm:$0xf]
        %v361 = vld [vmem:[%s293 + $0x38] sm:$0xf]
        %v362 = vld [vmem:[%s293 + $0x3c] sm:$0xf]
        %v363 = vunpack.c.l.bf16 %v347
        %v364 = vunpack.c.l.bf16 %v348
        %v365 = vunpack.c.l.bf16 %v349
        %v366 = vunpack.c.l.bf16 %v350
        %v367 = vunpack.c.l.bf16 %v351
        %v368 = vunpack.c.l.bf16 %v352
        %v369 = vunpack.c.l.bf16 %v353
        %v370 = vunpack.c.l.bf16 %v354
        %v371 = vunpack.c.l.bf16 %v355
        %v372 = vunpack.c.l.bf16 %v356
        %v373 = vunpack.c.l.bf16 %v357
        %v374 = vunpack.c.l.bf16 %v358
        %v375 = vunpack.c.l.bf16 %v359
        %v376 = vunpack.c.l.bf16 %v360
        %v377 = vunpack.c.l.bf16 %v361
        %v378 = vunpack.c.l.bf16 %v362
        %v379 = vld [vmem:[#allocation5] sm:$0xff]
        %v380 = vld [vmem:[#allocation5 + $0x8] sm:$0xff]
        %v381 = vld [vmem:[#allocation5 + $0x10] sm:$0xff]
        %v382 = vld [vmem:[#allocation5 + $0x18] sm:$0xff]
        %v383 = vld [vmem:[#allocation5 + $0x20] sm:$0xff]
        %v384 = vld [vmem:[#allocation5 + $0x28] sm:$0xff]
        %v385 = vld [vmem:[#allocation5 + $0x30] sm:$0xff]
        %v386 = vld [vmem:[#allocation5 + $0x38] sm:$0xff]
        %v387 = vld [vmem:[#allocation5 + $0x40] sm:$0xff]
        %v388 = vld [vmem:[#allocation5 + $0x48] sm:$0xff]
        %v389 = vld [vmem:[#allocation5 + $0x50] sm:$0xff]
        %v390 = vld [vmem:[#allocation5 + $0x58] sm:$0xff]
        %v391 = vld [vmem:[#allocation5 + $0x60] sm:$0xff]
        %v392 = vld [vmem:[#allocation5 + $0x68] sm:$0xff]
        %v393 = vld [vmem:[#allocation5 + $0x70] sm:$0xff]
        %v394 = vld [vmem:[#allocation5 + $0x78] sm:$0xff]
        %v396 = vlaneseq
        %v397 = vshrl.u32 %v396, 7
        %v398 = vsub.s32 0, %v397
        %v399 = vrot.slane %v343, %v398
        %v400 = vlaneseq
        %v401 = vshrl.u32 %v400, 7
        %v402 = vsub.s32 1, %v401
        %v403 = vrot.slane %v343, %v402
        %v422 = vunpack.c.l.b16 %v347
        %v423 = vunpack.c.l.b16 %v348
        %v424 = vunpack.c.l.b16 %v349
        %v425 = vunpack.c.l.b16 %v350
        %v426 = vunpack.c.l.b16 %v351
        %v427 = vunpack.c.l.b16 %v352
        %v428 = vunpack.c.l.b16 %v353
        %v429 = vunpack.c.l.b16 %v354
        %v430 = vunpack.c.l.b16 %v355
        %v431 = vunpack.c.l.b16 %v356
        %v432 = vunpack.c.l.b16 %v357
        %v433 = vunpack.c.l.b16 %v358
        %v434 = vunpack.c.l.b16 %v359
        %v435 = vunpack.c.l.b16 %v360
        %v436 = vunpack.c.l.b16 %v361
        %v437 = vunpack.c.l.b16 %v362
        %v438 = vpack.c.b16 %v423, %v422
        %v439 = vpack.c.b16 %v425, %v424
        %v440 = vpack.c.b16 %v427, %v426
        %v441 = vpack.c.b16 %v429, %v428
        %v442 = vpack.c.b16 %v431, %v430
        %v443 = vpack.c.b16 %v433, %v432
        %v444 = vpack.c.b16 %v435, %v434
        %v445 = vpack.c.b16 %v437, %v436
        %v470 = vunpack.c.l.b16 %v379
        %v471 = vunpack.c.h.b16 %v379
        %v472 = vunpack.c.l.b16 %v380
        %v473 = vunpack.c.h.b16 %v380
        %v474 = vunpack.c.l.b16 %v381
        %v475 = vunpack.c.h.b16 %v381
        %v476 = vunpack.c.l.b16 %v382
        %v477 = vunpack.c.h.b16 %v382
        %v478 = vunpack.c.l.b16 %v383
        %v479 = vunpack.c.h.b16 %v383
        %v480 = vunpack.c.l.b16 %v384
        %v481 = vunpack.c.h.b16 %v384
        %v482 = vunpack.c.l.b16 %v385
        %v483 = vunpack.c.h.b16 %v385
        %v484 = vunpack.c.l.b16 %v386
        %v485 = vunpack.c.h.b16 %v386
        %v486 = vunpack.c.l.b16 %v387
        %v487 = vunpack.c.h.b16 %v387
        %v488 = vunpack.c.l.b16 %v388
        %v489 = vunpack.c.h.b16 %v388
        %v490 = vunpack.c.l.b16 %v389
        %v491 = vunpack.c.h.b16 %v389
        %v492 = vunpack.c.l.b16 %v390
        %v493 = vunpack.c.h.b16 %v390
        %v494 = vunpack.c.l.b16 %v391
        %v495 = vunpack.c.h.b16 %v391
        %v496 = vunpack.c.l.b16 %v392
        %v497 = vunpack.c.h.b16 %v392
        %v498 = vunpack.c.l.b16 %v393
        %v499 = vunpack.c.h.b16 %v393
        %v500 = vunpack.c.l.b16 %v394
        %v501 = vunpack.c.h.b16 %v394
        %v502 = vpack.c.b16 %v472, %v470
        %v503 = vpack.c.b16 %v473, %v471
        %v504 = vpack.c.b16 %v476, %v474
        %v505 = vpack.c.b16 %v477, %v475
        %v506 = vpack.c.b16 %v480, %v478
        %v507 = vpack.c.b16 %v481, %v479
        %v508 = vpack.c.b16 %v484, %v482
        %v509 = vpack.c.b16 %v485, %v483
        %v510 = vpack.c.b16 %v488, %v486
        %v511 = vpack.c.b16 %v489, %v487
        %v512 = vpack.c.b16 %v492, %v490
        %v513 = vpack.c.b16 %v493, %v491
        %v514 = vpack.c.b16 %v496, %v494
        %v515 = vpack.c.b16 %v497, %v495
        %v516 = vpack.c.b16 %v500, %v498
        %v517 = vpack.c.b16 %v501, %v499
        %534 = vmatprep.subr.bf16.mxu0 %v503
        %535 = vmatpush1.bf16.msra.mxu0 %v502
        %536 = vmatprep.subr.bf16.mxu0 %v505
        %537 = vmatpush1.bf16.msra.mxu0 %v504
        %538 = vmatprep.subr.bf16.mxu0 %v507
        %539 = vmatpush1.bf16.msra.mxu0 %v506
        %540 = vmatprep.subr.bf16.mxu0 %v509
        %541 = vmatpush1.bf16.msra.mxu0 %v508
        %542 = vmatprep.subr.bf16.mxu0 %v511
        %543 = vmatpush1.bf16.msra.mxu0 %v510
        %544 = vmatprep.subr.bf16.mxu0 %v513
        %545 = vmatpush1.bf16.msra.mxu0 %v512
        %546 = vmatprep.subr.bf16.mxu0 %v515
        %547 = vmatpush1.bf16.msra.mxu0 %v514
        %548 = vmatprep.subr.bf16.mxu0 %v517
        %549 = vmatpush1.bf16.msra.mxu0 %v516
        %550 = vmatprep.subr.bf16.mxu0 0
        %551 = vmatpush1.bf16.msra.mxu0 0
        %552 = vmatprep.subr.bf16.mxu0 0
        %553 = vmatpush1.bf16.msra.mxu0 0
        %554 = vmatprep.subr.bf16.mxu0 0
        %555 = vmatpush1.bf16.msra.mxu0 0
        %556 = vmatprep.subr.bf16.mxu0 0
        %557 = vmatpush1.bf16.msra.mxu0 0
        %558 = vmatprep.subr.bf16.mxu0 0
        %559 = vmatpush1.bf16.msra.mxu0 0
        %560 = vmatprep.subr.bf16.mxu0 0
        %561 = vmatpush1.bf16.msra.mxu0 0
        %562 = vmatprep.subr.bf16.mxu0 0
        %563 = vmatpush1.bf16.msra.mxu0 0
        %564 = vmatprep.subr.bf16.mxu0 0
        %565 = vmatpush1.bf16.msra.mxu0 0
        %566 = vmatprep.mubr.bf16.mxu0 0
        %567 = vmatmul.mubr.bf16.gmra.mrb[0].mxu0 %v438
        %v568 = vpop.f32.mrb[0].mxu0
        %v569 = vadd.f32 %v399, %v568
        %v570 = vpop.f32.mrb[0].mxu0
        %v571 = vadd.f32 %v403, %v570
        %v572 = vpop.f32.mrb[0].mxu0
        %v573 = vadd.f32 %v399, %v572
        %v574 = vpop.f32.mrb[0].mxu0
        %v575 = vadd.f32 %v403, %v574
        %576 = vmatprep.mubr.bf16.mxu0 0
        %577 = vmatmul.mubr.bf16.gmra.mrb[0].mxu0 %v439
        %v578 = vpop.f32.mrb[0].mxu0
        %v579 = vadd.f32 %v399, %v578
        %v580 = vpop.f32.mrb[0].mxu0
        %v581 = vadd.f32 %v403, %v580
        %v582 = vpop.f32.mrb[0].mxu0
        %v583 = vadd.f32 %v399, %v582
        %v584 = vpop.f32.mrb[0].mxu0
        %v585 = vadd.f32 %v403, %v584
        %586 = vmatprep.mubr.bf16.mxu0 0
        %587 = vmatmul.mubr.bf16.gmra.mrb[0].mxu0 %v440
        %v588 = vpop.f32.mrb[0].mxu0
        %v589 = vadd.f32 %v399, %v588
        %v590 = vpop.f32.mrb[0].mxu0
        %v591 = vadd.f32 %v403, %v590
        %v592 = vpop.f32.mrb[0].mxu0
        %v593 = vadd.f32 %v399, %v592
        %v594 = vpop.f32.mrb[0].mxu0
        %v595 = vadd.f32 %v403, %v594
        %596 = vmatprep.mubr.bf16.mxu0 0
        %597 = vmatmul.mubr.bf16.gmra.mrb[0].mxu0 %v441
        %v598 = vpop.f32.mrb[0].mxu0
        %v599 = vadd.f32 %v399, %v598
        %v600 = vpop.f32.mrb[0].mxu0
        %v601 = vadd.f32 %v403, %v600
        %v602 = vpop.f32.mrb[0].mxu0
        %v603 = vadd.f32 %v399, %v602
        %v604 = vpop.f32.mrb[0].mxu0
        %v605 = vadd.f32 %v403, %v604
        %606 = vmatprep.mubr.bf16.mxu0 0
        %607 = vmatmul.mubr.bf16.gmra.mrb[0].mxu0 %v442
        %v608 = vpop.f32.mrb[0].mxu0
        %v609 = vadd.f32 %v399, %v608
        %v610 = vpop.f32.mrb[0].mxu0
        %v611 = vadd.f32 %v403, %v610
        %v612 = vpop.f32.mrb[0].mxu0
        %v613 = vadd.f32 %v399, %v612
        %v614 = vpop.f32.mrb[0].mxu0
        %v615 = vadd.f32 %v403, %v614
        %616 = vmatprep.mubr.bf16.mxu0 0
        %617 = vmatmul.mubr.bf16.gmra.mrb[0].mxu0 %v443
        %v618 = vpop.f32.mrb[0].mxu0
        %v619 = vadd.f32 %v399, %v618
        %v620 = vpop.f32.mrb[0].mxu0
        %v621 = vadd.f32 %v403, %v620
        %v622 = vpop.f32.mrb[0].mxu0
        %v623 = vadd.f32 %v399, %v622
        %v624 = vpop.f32.mrb[0].mxu0
        %v625 = vadd.f32 %v403, %v624
        %626 = vmatprep.mubr.bf16.mxu0 0
        %627 = vmatmul.mubr.bf16.gmra.mrb[0].mxu0 %v444
        %v628 = vpop.f32.mrb[0].mxu0
        %v629 = vadd.f32 %v399, %v628
        %v630 = vpop.f32.mrb[0].mxu0
        %v631 = vadd.f32 %v403, %v630
        %v632 = vpop.f32.mrb[0].mxu0
        %v633 = vadd.f32 %v399, %v632
        %v634 = vpop.f32.mrb[0].mxu0
        %v635 = vadd.f32 %v403, %v634
        %636 = vmatprep.mubr.bf16.mxu0 0
        %637 = vmatmul.mubr.bf16.gmra.mrb[0].mxu0 %v445
        %v638 = vpop.f32.mrb[0].mxu0
        %v639 = vadd.f32 %v399, %v638
        %v640 = vpop.f32.mrb[0].mxu0
        %v641 = vadd.f32 %v403, %v640
        %v642 = vpop.f32.mrb[0].mxu0
        %v643 = vadd.f32 %v399, %v642
        %v644 = vpop.f32.mrb[0].mxu0
        %v645 = vadd.f32 %v403, %v644
        %646 = vdwg.mxu0
        %v647 = vmax.f32 %v569, 0.0
        %v648 = vmax.f32 %v571, 0.0
        %v649 = vmax.f32 %v573, 0.0
        %v650 = vmax.f32 %v575, 0.0
        %v651 = vmax.f32 %v579, 0.0
        %v652 = vmax.f32 %v581, 0.0
        %v653 = vmax.f32 %v583, 0.0
        %v654 = vmax.f32 %v585, 0.0
        %v655 = vmax.f32 %v589, 0.0
        %v656 = vmax.f32 %v591, 0.0
        %v657 = vmax.f32 %v593, 0.0
        %v658 = vmax.f32 %v595, 0.0
        %v659 = vmax.f32 %v599, 0.0
        %v660 = vmax.f32 %v601, 0.0
        %v661 = vmax.f32 %v603, 0.0
        %v662 = vmax.f32 %v605, 0.0
        %v663 = vmax.f32 %v609, 0.0
        %v664 = vmax.f32 %v611, 0.0
        %v665 = vmax.f32 %v613, 0.0
        %v666 = vmax.f32 %v615, 0.0
        %v667 = vmax.f32 %v619, 0.0
        %v668 = vmax.f32 %v621, 0.0
        %v669 = vmax.f32 %v623, 0.0
        %v670 = vmax.f32 %v625, 0.0
        %v671 = vmax.f32 %v629, 0.0
        %v672 = vmax.f32 %v631, 0.0
        %v673 = vmax.f32 %v633, 0.0
        %v674 = vmax.f32 %v635, 0.0
        %v675 = vmax.f32 %v639, 0.0
        %v676 = vmax.f32 %v641, 0.0
        %v677 = vmax.f32 %v643, 0.0
        %v678 = vmax.f32 %v645, 0.0
        %v679 = vpack.c.bf16 %v649, %v647
        %v680 = vpack.c.bf16 %v650, %v648
        %v681 = vpack.c.bf16 %v653, %v651
        %v682 = vpack.c.bf16 %v654, %v652
        %v683 = vpack.c.bf16 %v657, %v655
        %v684 = vpack.c.bf16 %v658, %v656
        %v685 = vpack.c.bf16 %v661, %v659
        %v686 = vpack.c.bf16 %v662, %v660
        %v687 = vpack.c.bf16 %v665, %v663
        %v688 = vpack.c.bf16 %v666, %v664
        %v689 = vpack.c.bf16 %v669, %v667
        %v690 = vpack.c.bf16 %v670, %v668
        %v691 = vpack.c.bf16 %v673, %v671
        %v692 = vpack.c.bf16 %v674, %v672
        %v693 = vpack.c.bf16 %v677, %v675
        %v694 = vpack.c.bf16 %v678, %v676
        %v695 = vld [vmem:[#allocation7] sm:$0xf]
        %v696 = vld [vmem:[#allocation7 + $0x4] sm:$0xf]
        %v697 = vld [vmem:[#allocation7 + $0x8] sm:$0xf]
        %v698 = vld [vmem:[#allocation7 + $0xc] sm:$0xf]
        %v699 = vld [vmem:[#allocation7 + $0x10] sm:$0xf]
        %v700 = vld [vmem:[#allocation7 + $0x14] sm:$0xf]
        %v701 = vld [vmem:[#allocation7 + $0x18] sm:$0xf]
        %v702 = vld [vmem:[#allocation7 + $0x1c] sm:$0xf]
        %v703 = vld [vmem:[#allocation7 + $0x20] sm:$0xf]
        %v704 = vld [vmem:[#allocation7 + $0x24] sm:$0xf]
        %v705 = vld [vmem:[#allocation7 + $0x28] sm:$0xf]
        %v706 = vld [vmem:[#allocation7 + $0x2c] sm:$0xf]
        %v707 = vld [vmem:[#allocation7 + $0x30] sm:$0xf]
        %v708 = vld [vmem:[#allocation7 + $0x34] sm:$0xf]
        %v709 = vld [vmem:[#allocation7 + $0x38] sm:$0xf]
        %v710 = vld [vmem:[#allocation7 + $0x3c] sm:$0xf]
        %v711 = vld [vmem:[#allocation7 + $0x40] sm:$0xf]
        %v712 = vld [vmem:[#allocation7 + $0x44] sm:$0xf]
        %v713 = vld [vmem:[#allocation7 + $0x48] sm:$0xf]
        %v714 = vld [vmem:[#allocation7 + $0x4c] sm:$0xf]
        %v715 = vld [vmem:[#allocation7 + $0x50] sm:$0xf]
        %v716 = vld [vmem:[#allocation7 + $0x54] sm:$0xf]
        %v717 = vld [vmem:[#allocation7 + $0x58] sm:$0xf]
        %v718 = vld [vmem:[#allocation7 + $0x5c] sm:$0xf]
        %v719 = vld [vmem:[#allocation7 + $0x60] sm:$0xf]
        %v720 = vld [vmem:[#allocation7 + $0x64] sm:$0xf]
        %v721 = vld [vmem:[#allocation7 + $0x68] sm:$0xf]
        %v722 = vld [vmem:[#allocation7 + $0x6c] sm:$0xf]
        %v723 = vld [vmem:[#allocation7 + $0x70] sm:$0xf]
        %v724 = vld [vmem:[#allocation7 + $0x74] sm:$0xf]
        %v725 = vld [vmem:[#allocation7 + $0x78] sm:$0xf]
        %v726 = vld [vmem:[#allocation7 + $0x7c] sm:$0xf]
        %v759 = vunpack.c.l.b16 %v695
        %v760 = vunpack.c.l.b16 %v696
        %v761 = vunpack.c.l.b16 %v697
        %v762 = vunpack.c.l.b16 %v698
        %v763 = vunpack.c.l.b16 %v699
        %v764 = vunpack.c.l.b16 %v700
        %v765 = vunpack.c.l.b16 %v701
        %v766 = vunpack.c.l.b16 %v702
        %v767 = vunpack.c.l.b16 %v703
        %v768 = vunpack.c.l.b16 %v704
        %v769 = vunpack.c.l.b16 %v705
        %v770 = vunpack.c.l.b16 %v706
        %v771 = vunpack.c.l.b16 %v707
        %v772 = vunpack.c.l.b16 %v708
        %v773 = vunpack.c.l.b16 %v709
        %v774 = vunpack.c.l.b16 %v710
        %v775 = vunpack.c.l.b16 %v711
        %v776 = vunpack.c.l.b16 %v712
        %v777 = vunpack.c.l.b16 %v713
        %v778 = vunpack.c.l.b16 %v714
        %v779 = vunpack.c.l.b16 %v715
        %v780 = vunpack.c.l.b16 %v716
        %v781 = vunpack.c.l.b16 %v717
        %v782 = vunpack.c.l.b16 %v718
        %v783 = vunpack.c.l.b16 %v719
        %v784 = vunpack.c.l.b16 %v720
        %v785 = vunpack.c.l.b16 %v721
        %v786 = vunpack.c.l.b16 %v722
        %v787 = vunpack.c.l.b16 %v723
        %v788 = vunpack.c.l.b16 %v724
        %v789 = vunpack.c.l.b16 %v725
        %v790 = vunpack.c.l.b16 %v726
        %v791 = vpack.c.b16 %v760, %v759
        %v792 = vpack.c.b16 %v762, %v761
        %v793 = vpack.c.b16 %v764, %v763
        %v794 = vpack.c.b16 %v766, %v765
        %v795 = vpack.c.b16 %v768, %v767
        %v796 = vpack.c.b16 %v770, %v769
        %v797 = vpack.c.b16 %v772, %v771
        %v798 = vpack.c.b16 %v774, %v773
        %v799 = vpack.c.b16 %v776, %v775
        %v800 = vpack.c.b16 %v778, %v777
        %v801 = vpack.c.b16 %v780, %v779
        %v802 = vpack.c.b16 %v782, %v781
        %v803 = vpack.c.b16 %v784, %v783
        %v804 = vpack.c.b16 %v786, %v785
        %v805 = vpack.c.b16 %v788, %v787
        %v806 = vpack.c.b16 %v790, %v789
        %823 = vmatprep.subr.bf16.mxu0 0
        %824 = vmatpush1.bf16.msra.mxu0 %v791
        %825 = vmatprep.subr.bf16.mxu0 0
        %826 = vmatpush1.bf16.msra.mxu0 %v792
        %827 = vmatprep.subr.bf16.mxu0 0
        %828 = vmatpush1.bf16.msra.mxu0 %v793
        %829 = vmatprep.subr.bf16.mxu0 0
        %830 = vmatpush1.bf16.msra.mxu0 %v794
        %831 = vmatprep.subr.bf16.mxu0 0
        %832 = vmatpush1.bf16.msra.mxu0 %v795
        %833 = vmatprep.subr.bf16.mxu0 0
        %834 = vmatpush1.bf16.msra.mxu0 %v796
        %835 = vmatprep.subr.bf16.mxu0 0
        %836 = vmatpush1.bf16.msra.mxu0 %v797
        %837 = vmatprep.subr.bf16.mxu0 0
        %838 = vmatpush1.bf16.msra.mxu0 %v798
        %839 = vmatprep.subr.bf16.mxu0 0
        %840 = vmatpush1.bf16.msra.mxu0 %v799
        %841 = vmatprep.subr.bf16.mxu0 0
        %842 = vmatpush1.bf16.msra.mxu0 %v800
        %843 = vmatprep.subr.bf16.mxu0 0
        %844 = vmatpush1.bf16.msra.mxu0 %v801
        %845 = vmatprep.subr.bf16.mxu0 0
        %846 = vmatpush1.bf16.msra.mxu0 %v802
        %847 = vmatprep.subr.bf16.mxu0 0
        %848 = vmatpush1.bf16.msra.mxu0 %v803
        %849 = vmatprep.subr.bf16.mxu0 0
        %850 = vmatpush1.bf16.msra.mxu0 %v804
        %851 = vmatprep.subr.bf16.mxu0 0
        %852 = vmatpush1.bf16.msra.mxu0 %v805
        %853 = vmatprep.subr.bf16.mxu0 0
        %854 = vmatpush1.bf16.msra.mxu0 %v806
        %855 = vmatprep.mubr.bf16.mxu0 %v680
        %856 = vmatmul.mubr.bf16.gmra.mrb[0].mxu0 %v679
        %v857 = vpop.f32.mrb[0].mxu0
        %v858 = vadd.f32 0.0, %v857
        %v859 = vpop.f32.mrb[0].mxu0
        %v860 = vpop.f32.mrb[0].mxu0
        %v861 = vadd.f32 0.0, %v860
        %v862 = vpop.f32.mrb[0].mxu0
        %863 = vmatprep.mubr.bf16.mxu0 %v682
        %864 = vmatmul.mubr.bf16.gmra.mrb[0].mxu0 %v681
        %v865 = vpop.f32.mrb[0].mxu0
        %v866 = vadd.f32 0.0, %v865
        %v867 = vpop.f32.mrb[0].mxu0
        %v868 = vpop.f32.mrb[0].mxu0
        %v869 = vadd.f32 0.0, %v868
        %v870 = vpop.f32.mrb[0].mxu0
        %871 = vmatprep.mubr.bf16.mxu0 %v684
        %872 = vmatmul.mubr.bf16.gmra.mrb[0].mxu0 %v683
        %v873 = vpop.f32.mrb[0].mxu0
        %v874 = vadd.f32 0.0, %v873
        %v875 = vpop.f32.mrb[0].mxu0
        %v876 = vpop.f32.mrb[0].mxu0
        %v877 = vadd.f32 0.0, %v876
        %v878 = vpop.f32.mrb[0].mxu0
        %879 = vmatprep.mubr.bf16.mxu0 %v686
        %880 = vmatmul.mubr.bf16.gmra.mrb[0].mxu0 %v685
        %v881 = vpop.f32.mrb[0].mxu0
        %v882 = vadd.f32 0.0, %v881
        %v883 = vpop.f32.mrb[0].mxu0
        %v884 = vpop.f32.mrb[0].mxu0
        %v885 = vadd.f32 0.0, %v884
        %v886 = vpop.f32.mrb[0].mxu0
        %887 = vmatprep.mubr.bf16.mxu0 %v688
        %888 = vmatmul.mubr.bf16.gmra.mrb[0].mxu0 %v687
        %v889 = vpop.f32.mrb[0].mxu0
        %v890 = vadd.f32 0.0, %v889
        %v891 = vpop.f32.mrb[0].mxu0
        %v892 = vpop.f32.mrb[0].mxu0
        %v893 = vadd.f32 0.0, %v892
        %v894 = vpop.f32.mrb[0].mxu0
        %895 = vmatprep.mubr.bf16.mxu0 %v690
        %896 = vmatmul.mubr.bf16.gmra.mrb[0].mxu0 %v689
        %v897 = vpop.f32.mrb[0].mxu0
        %v898 = vadd.f32 0.0, %v897
        %v899 = vpop.f32.mrb[0].mxu0
        %v900 = vpop.f32.mrb[0].mxu0
        %v901 = vadd.f32 0.0, %v900
        %v902 = vpop.f32.mrb[0].mxu0
        %903 = vmatprep.mubr.bf16.mxu0 %v692
        %904 = vmatmul.mubr.bf16.gmra.mrb[0].mxu0 %v691
        %v905 = vpop.f32.mrb[0].mxu0
        %v906 = vadd.f32 0.0, %v905
        %v907 = vpop.f32.mrb[0].mxu0
        %v908 = vpop.f32.mrb[0].mxu0
        %v909 = vadd.f32 0.0, %v908
        %v910 = vpop.f32.mrb[0].mxu0
        %911 = vmatprep.mubr.bf16.mxu0 %v694
        %912 = vmatmul.mubr.bf16.gmra.mrb[0].mxu0 %v693
        %v913 = vpop.f32.mrb[0].mxu0
        %v914 = vadd.f32 0.0, %v913
        %v915 = vpop.f32.mrb[0].mxu0
        %v916 = vpop.f32.mrb[0].mxu0
        %v917 = vadd.f32 0.0, %v916
        %v918 = vpop.f32.mrb[0].mxu0
        %919 = vdwg.mxu0
        %v920 = vadd.f32 %v363, %v858
        %v921 = vadd.f32 %v364, %v861
        %v922 = vadd.f32 %v365, %v866
        %v923 = vadd.f32 %v366, %v869
        %v924 = vadd.f32 %v367, %v874
        %v925 = vadd.f32 %v368, %v877
        %v926 = vadd.f32 %v369, %v882
        %v927 = vadd.f32 %v370, %v885
        %v928 = vadd.f32 %v371, %v890
        %v929 = vadd.f32 %v372, %v893
        %v930 = vadd.f32 %v373, %v898
        %v931 = vadd.f32 %v374, %v901
        %v932 = vadd.f32 %v375, %v906
        %v933 = vadd.f32 %v376, %v909
        %v934 = vadd.f32 %v377, %v914
        %v935 = vadd.f32 %v378, %v917
        %v937 = vlaneseq
        %v938 = vshrl.u32 %v937, 7
        %v939 = vsub.s32 0, %v938
        %v940 = vrot.slane %v344, %v939
        %v942 = vadd.f32 %v920, %v940
        %v943 = vadd.f32 %v921, %v940
        %v944 = vadd.f32 %v922, %v940
        %v945 = vadd.f32 %v923, %v940
        %v946 = vadd.f32 %v924, %v940
        %v947 = vadd.f32 %v925, %v940
        %v948 = vadd.f32 %v926, %v940
        %v949 = vadd.f32 %v927, %v940
        %v950 = vadd.f32 %v928, %v940
        %v951 = vadd.f32 %v929, %v940
        %v952 = vadd.f32 %v930, %v940
        %v953 = vadd.f32 %v931, %v940
        %v954 = vadd.f32 %v932, %v940
        %v955 = vadd.f32 %v933, %v940
        %v956 = vadd.f32 %v934, %v940
        %v957 = vadd.f32 %v935, %v940
        %958 = vadd.xlane.f32.xlu0 %v942
        %v959 = vpop.xlane.xlu0 %958
        %960 = vadd.xlane.f32.xlu0 %v943
        %v961 = vpop.xlane.xlu0 %960
        %962 = vadd.xlane.f32.xlu0 %v944
        %v963 = vpop.xlane.xlu0 %962
        %964 = vadd.xlane.f32.xlu0 %v945
        %v965 = vpop.xlane.xlu0 %964
        %966 = vadd.xlane.f32.xlu0 %v946
        %v967 = vpop.xlane.xlu0 %966
        %968 = vadd.xlane.f32.xlu0 %v947
        %v969 = vpop.xlane.xlu0 %968
        %970 = vadd.xlane.f32.xlu0 %v948
        %v971 = vpop.xlane.xlu0 %970
        %972 = vadd.xlane.f32.xlu0 %v949
        %v973 = vpop.xlane.xlu0 %972
        %974 = vadd.xlane.f32.xlu0 %v950
        %v975 = vpop.xlane.xlu0 %974
        %976 = vadd.xlane.f32.xlu0 %v951
        %v977 = vpop.xlane.xlu0 %976
        %978 = vadd.xlane.f32.xlu0 %v952
        %v979 = vpop.xlane.xlu0 %978
        %980 = vadd.xlane.f32.xlu0 %v953
        %v981 = vpop.xlane.xlu0 %980
        %982 = vadd.xlane.f32.xlu0 %v954
        %v983 = vpop.xlane.xlu0 %982
        %984 = vadd.xlane.f32.xlu0 %v955
        %v985 = vpop.xlane.xlu0 %984
        %986 = vadd.xlane.f32.xlu0 %v956
        %v987 = vpop.xlane.xlu0 %986
        %988 = vadd.xlane.f32.xlu0 %v957
        %v989 = vpop.xlane.xlu0 %988
        %v990 = vmul.f32 %v942, %v942
        %v991 = vmul.f32 %v943, %v943
        %v992 = vmul.f32 %v944, %v944
        %v993 = vmul.f32 %v945, %v945
        %v994 = vmul.f32 %v946, %v946
        %v995 = vmul.f32 %v947, %v947
        %v996 = vmul.f32 %v948, %v948
        %v997 = vmul.f32 %v949, %v949
        %v998 = vmul.f32 %v950, %v950
        %v999 = vmul.f32 %v951, %v951
        %v1000 = vmul.f32 %v952, %v952
        %v1001 = vmul.f32 %v953, %v953
        %v1002 = vmul.f32 %v954, %v954
        %v1003 = vmul.f32 %v955, %v955
        %v1004 = vmul.f32 %v956, %v956
        %v1005 = vmul.f32 %v957, %v957
        %1006 = vadd.xlane.f32.xlu0 %v990
        %v1007 = vpop.xlane.xlu0 %1006
        %1008 = vadd.xlane.f32.xlu0 %v991
        %v1009 = vpop.xlane.xlu0 %1008
        %1010 = vadd.xlane.f32.xlu0 %v992
        %v1011 = vpop.xlane.xlu0 %1010
        %1012 = vadd.xlane.f32.xlu0 %v993
        %v1013 = vpop.xlane.xlu0 %1012
        %1014 = vadd.xlane.f32.xlu0 %v994
        %v1015 = vpop.xlane.xlu0 %1014
        %1016 = vadd.xlane.f32.xlu0 %v995
        %v1017 = vpop.xlane.xlu0 %1016
        %1018 = vadd.xlane.f32.xlu0 %v996
        %v1019 = vpop.xlane.xlu0 %1018
        %1020 = vadd.xlane.f32.xlu0 %v997
        %v1021 = vpop.xlane.xlu0 %1020
        %1022 = vadd.xlane.f32.xlu0 %v998
        %v1023 = vpop.xlane.xlu0 %1022
        %1024 = vadd.xlane.f32.xlu0 %v999
        %v1025 = vpop.xlane.xlu0 %1024
        %1026 = vadd.xlane.f32.xlu0 %v1000
        %v1027 = vpop.xlane.xlu0 %1026
        %1028 = vadd.xlane.f32.xlu0 %v1001
        %v1029 = vpop.xlane.xlu0 %1028
        %1030 = vadd.xlane.f32.xlu0 %v1002
        %v1031 = vpop.xlane.xlu0 %1030
        %1032 = vadd.xlane.f32.xlu0 %v1003
        %v1033 = vpop.xlane.xlu0 %1032
        %1034 = vadd.xlane.f32.xlu0 %v1004
        %v1035 = vpop.xlane.xlu0 %1034
        %1036 = vadd.xlane.f32.xlu0 %v1005
        %v1037 = vpop.xlane.xlu0 %1036
        %v1038 = vmul.f32 %v959, 0.0078125
        %v1039 = vmul.f32 %v961, 0.0078125
        %v1040 = vmul.f32 %v963, 0.0078125
        %v1041 = vmul.f32 %v965, 0.0078125
        %v1042 = vmul.f32 %v967, 0.0078125
        %v1043 = vmul.f32 %v969, 0.0078125
        %v1044 = vmul.f32 %v971, 0.0078125
        %v1045 = vmul.f32 %v973, 0.0078125
        %v1046 = vmul.f32 %v975, 0.0078125
        %v1047 = vmul.f32 %v977, 0.0078125
        %v1048 = vmul.f32 %v979, 0.0078125
        %v1049 = vmul.f32 %v981, 0.0078125
        %v1050 = vmul.f32 %v983, 0.0078125
        %v1051 = vmul.f32 %v985, 0.0078125
        %v1052 = vmul.f32 %v987, 0.0078125
        %v1053 = vmul.f32 %v989, 0.0078125
        %v1054 = vmul.f32 %v1007, 0.0078125
        %v1055 = vmul.f32 %v1009, 0.0078125
        %v1056 = vmul.f32 %v1011, 0.0078125
        %v1057 = vmul.f32 %v1013, 0.0078125
        %v1058 = vmul.f32 %v1015, 0.0078125
        %v1059 = vmul.f32 %v1017, 0.0078125
        %v1060 = vmul.f32 %v1019, 0.0078125
        %v1061 = vmul.f32 %v1021, 0.0078125
        %v1062 = vmul.f32 %v1023, 0.0078125
        %v1063 = vmul.f32 %v1025, 0.0078125
        %v1064 = vmul.f32 %v1027, 0.0078125
        %v1065 = vmul.f32 %v1029, 0.0078125
        %v1066 = vmul.f32 %v1031, 0.0078125
        %v1067 = vmul.f32 %v1033, 0.0078125
        %v1068 = vmul.f32 %v1035, 0.0078125
        %v1069 = vmul.f32 %v1037, 0.0078125
        %v1070 = vmul.f32 %v1038, %v1038
        %v1071 = vmul.f32 %v1039, %v1039
        %v1072 = vmul.f32 %v1040, %v1040
        %v1073 = vmul.f32 %v1041, %v1041
        %v1074 = vmul.f32 %v1042, %v1042
        %v1075 = vmul.f32 %v1043, %v1043
        %v1076 = vmul.f32 %v1044, %v1044
        %v1077 = vmul.f32 %v1045, %v1045
        %v1078 = vmul.f32 %v1046, %v1046
        %v1079 = vmul.f32 %v1047, %v1047
        %v1080 = vmul.f32 %v1048, %v1048
        %v1081 = vmul.f32 %v1049, %v1049
        %v1082 = vmul.f32 %v1050, %v1050
        %v1083 = vmul.f32 %v1051, %v1051
        %v1084 = vmul.f32 %v1052, %v1052
        %v1085 = vmul.f32 %v1053, %v1053
        %v1086 = vsub.f32 %v1054, %v1070
        %v1087 = vsub.f32 %v1055, %v1071
        %v1088 = vsub.f32 %v1056, %v1072
        %v1089 = vsub.f32 %v1057, %v1073
        %v1090 = vsub.f32 %v1058, %v1074
        %v1091 = vsub.f32 %v1059, %v1075
        %v1092 = vsub.f32 %v1060, %v1076
        %v1093 = vsub.f32 %v1061, %v1077
        %v1094 = vsub.f32 %v1062, %v1078
        %v1095 = vsub.f32 %v1063, %v1079
        %v1096 = vsub.f32 %v1064, %v1080
        %v1097 = vsub.f32 %v1065, %v1081
        %v1098 = vsub.f32 %v1066, %v1082
        %v1099 = vsub.f32 %v1067, %v1083
        %v1100 = vsub.f32 %v1068, %v1084
        %v1101 = vsub.f32 %v1069, %v1085
        %v1102 = vmax.f32 %v1086, 0.0
        %v1103 = vmax.f32 %v1087, 0.0
        %v1104 = vmax.f32 %v1088, 0.0
        %v1105 = vmax.f32 %v1089, 0.0
        %v1106 = vmax.f32 %v1090, 0.0
        %v1107 = vmax.f32 %v1091, 0.0
        %v1108 = vmax.f32 %v1092, 0.0
        %v1109 = vmax.f32 %v1093, 0.0
        %v1110 = vmax.f32 %v1094, 0.0
        %v1111 = vmax.f32 %v1095, 0.0
        %v1112 = vmax.f32 %v1096, 0.0
        %v1113 = vmax.f32 %v1097, 0.0
        %v1114 = vmax.f32 %v1098, 0.0
        %v1115 = vmax.f32 %v1099, 0.0
        %v1116 = vmax.f32 %v1100, 0.0
        %v1117 = vmax.f32 %v1101, 0.0
        %v1118 = vadd.f32 %v1102, 1e-05
        %v1119 = vadd.f32 %v1103, 1e-05
        %v1120 = vadd.f32 %v1104, 1e-05
        %v1121 = vadd.f32 %v1105, 1e-05
        %v1122 = vadd.f32 %v1106, 1e-05
        %v1123 = vadd.f32 %v1107, 1e-05
        %v1124 = vadd.f32 %v1108, 1e-05
        %v1125 = vadd.f32 %v1109, 1e-05
        %v1126 = vadd.f32 %v1110, 1e-05
        %v1127 = vadd.f32 %v1111, 1e-05
        %v1128 = vadd.f32 %v1112, 1e-05
        %v1129 = vadd.f32 %v1113, 1e-05
        %v1130 = vadd.f32 %v1114, 1e-05
        %v1131 = vadd.f32 %v1115, 1e-05
        %v1132 = vadd.f32 %v1116, 1e-05
        %v1133 = vadd.f32 %v1117, 1e-05
        %v1134 = vrsqrt.pop %v1118
        %v1135 = vrsqrt.pop %v1119
        %v1136 = vrsqrt.pop %v1120
        %v1137 = vrsqrt.pop %v1121
        %v1138 = vrsqrt.pop %v1122
        %v1139 = vrsqrt.pop %v1123
        %v1140 = vrsqrt.pop %v1124
        %v1141 = vrsqrt.pop %v1125
        %v1142 = vrsqrt.pop %v1126
        %v1143 = vrsqrt.pop %v1127
        %v1144 = vrsqrt.pop %v1128
        %v1145 = vrsqrt.pop %v1129
        %v1146 = vrsqrt.pop %v1130
        %v1147 = vrsqrt.pop %v1131
        %v1148 = vrsqrt.pop %v1132
        %v1149 = vrsqrt.pop %v1133
        %v1150 = vsub.f32 %v942, %v1038
        %v1151 = vsub.f32 %v943, %v1039
        %v1152 = vsub.f32 %v944, %v1040
        %v1153 = vsub.f32 %v945, %v1041
        %v1154 = vsub.f32 %v946, %v1042
        %v1155 = vsub.f32 %v947, %v1043
        %v1156 = vsub.f32 %v948, %v1044
        %v1157 = vsub.f32 %v949, %v1045
        %v1158 = vsub.f32 %v950, %v1046
        %v1159 = vsub.f32 %v951, %v1047
        %v1160 = vsub.f32 %v952, %v1048
        %v1161 = vsub.f32 %v953, %v1049
        %v1162 = vsub.f32 %v954, %v1050
        %v1163 = vsub.f32 %v955, %v1051
        %v1164 = vsub.f32 %v956, %v1052
        %v1165 = vsub.f32 %v957, %v1053
        %v1167 = vlaneseq
        %v1168 = vshrl.u32 %v1167, 7
        %v1169 = vsub.s32 0, %v1168
        %v1170 = vrot.slane %v345, %v1169
        %v1172 = vmul.f32 %v1134, %v1170
        %v1173 = vmul.f32 %v1135, %v1170
        %v1174 = vmul.f32 %v1136, %v1170
        %v1175 = vmul.f32 %v1137, %v1170
        %v1176 = vmul.f32 %v1138, %v1170
        %v1177 = vmul.f32 %v1139, %v1170
        %v1178 = vmul.f32 %v1140, %v1170
        %v1179 = vmul.f32 %v1141, %v1170
        %v1180 = vmul.f32 %v1142, %v1170
        %v1181 = vmul.f32 %v1143, %v1170
        %v1182 = vmul.f32 %v1144, %v1170
        %v1183 = vmul.f32 %v1145, %v1170
        %v1184 = vmul.f32 %v1146, %v1170
        %v1185 = vmul.f32 %v1147, %v1170
        %v1186 = vmul.f32 %v1148, %v1170
        %v1187 = vmul.f32 %v1149, %v1170
        %v1188 = vmul.f32 %v1150, %v1172
        %v1189 = vmul.f32 %v1151, %v1173
        %v1190 = vmul.f32 %v1152, %v1174
        %v1191 = vmul.f32 %v1153, %v1175
        %v1192 = vmul.f32 %v1154, %v1176
        %v1193 = vmul.f32 %v1155, %v1177
        %v1194 = vmul.f32 %v1156, %v1178
        %v1195 = vmul.f32 %v1157, %v1179
        %v1196 = vmul.f32 %v1158, %v1180
        %v1197 = vmul.f32 %v1159, %v1181
        %v1198 = vmul.f32 %v1160, %v1182
        %v1199 = vmul.f32 %v1161, %v1183
        %v1200 = vmul.f32 %v1162, %v1184
        %v1201 = vmul.f32 %v1163, %v1185
        %v1202 = vmul.f32 %v1164, %v1186
        %v1203 = vmul.f32 %v1165, %v1187
        %v1205 = vlaneseq
        %v1206 = vshrl.u32 %v1205, 7
        %v1207 = vsub.s32 0, %v1206
        %v1208 = vrot.slane %v346, %v1207
        %v1210 = vadd.f32 %v1188, %v1208
        %v1211 = vadd.f32 %v1189, %v1208
        %v1212 = vadd.f32 %v1190, %v1208
        %v1213 = vadd.f32 %v1191, %v1208
        %v1214 = vadd.f32 %v1192, %v1208
        %v1215 = vadd.f32 %v1193, %v1208
        %v1216 = vadd.f32 %v1194, %v1208
        %v1217 = vadd.f32 %v1195, %v1208
        %v1218 = vadd.f32 %v1196, %v1208
        %v1219 = vadd.f32 %v1197, %v1208
        %v1220 = vadd.f32 %v1198, %v1208
        %v1221 = vadd.f32 %v1199, %v1208
        %v1222 = vadd.f32 %v1200, %v1208
        %v1223 = vadd.f32 %v1201, %v1208
        %v1224 = vadd.f32 %v1202, %v1208
        %v1225 = vadd.f32 %v1203, %v1208
        %v1226 = vpack.c.bf16 %v1211, %v1210
        %v1227 = vpack.c.bf16 %v1213, %v1212
        %v1228 = vpack.c.bf16 %v1215, %v1214
        %v1229 = vpack.c.bf16 %v1217, %v1216
        %v1230 = vpack.c.bf16 %v1219, %v1218
        %v1231 = vpack.c.bf16 %v1221, %v1220
        %v1232 = vpack.c.bf16 %v1223, %v1222
        %v1233 = vpack.c.bf16 %v1225, %v1224
        %v1242 = vunpack.c.l.b16 %v1226
        %v1243 = vunpack.c.h.b16 %v1226
        %v1244 = vunpack.c.l.b16 %v1227
        %v1245 = vunpack.c.h.b16 %v1227
        %v1246 = vunpack.c.l.b16 %v1228
        %v1247 = vunpack.c.h.b16 %v1228
        %v1248 = vunpack.c.l.b16 %v1229
        %v1249 = vunpack.c.h.b16 %v1229
        %v1250 = vunpack.c.l.b16 %v1230
        %v1251 = vunpack.c.h.b16 %v1230
        %v1252 = vunpack.c.l.b16 %v1231
        %v1253 = vunpack.c.h.b16 %v1231
        %v1254 = vunpack.c.l.b16 %v1232
        %v1255 = vunpack.c.h.b16 %v1232
        %v1256 = vunpack.c.l.b16 %v1233
        %v1257 = vunpack.c.h.b16 %v1233
        %v1258 = vpack.c.b16 %v1242, %v1242
        %v1259 = vpack.c.b16 %v1243, %v1243
        %v1260 = vpack.c.b16 %v1244, %v1244
        %v1261 = vpack.c.b16 %v1245, %v1245
        %v1262 = vpack.c.b16 %v1246, %v1246
        %v1263 = vpack.c.b16 %v1247, %v1247
        %v1264 = vpack.c.b16 %v1248, %v1248
        %v1265 = vpack.c.b16 %v1249, %v1249
        %v1266 = vpack.c.b16 %v1250, %v1250
        %v1267 = vpack.c.b16 %v1251, %v1251
        %v1268 = vpack.c.b16 %v1252, %v1252
        %v1269 = vpack.c.b16 %v1253, %v1253
        %v1270 = vpack.c.b16 %v1254, %v1254
        %v1271 = vpack.c.b16 %v1255, %v1255
        %v1272 = vpack.c.b16 %v1256, %v1256
        %v1273 = vpack.c.b16 %v1257, %v1257
        %1290 = vst [vmem:[%s331] sm:$0xf] %v1258
        %1291 = vst [vmem:[%s331 + $0x4] sm:$0xf] %v1259
        %1292 = vst [vmem:[%s331 + $0x8] sm:$0xf] %v1260
        %1293 = vst [vmem:[%s331 + $0xc] sm:$0xf] %v1261
        %1294 = vst [vmem:[%s331 + $0x10] sm:$0xf] %v1262
        %1295 = vst [vmem:[%s331 + $0x14] sm:$0xf] %v1263
        %1296 = vst [vmem:[%s331 + $0x18] sm:$0xf] %v1264
        %1297 = vst [vmem:[%s331 + $0x1c] sm:$0xf] %v1265
        %1298 = vst [vmem:[%s331 + $0x20] sm:$0xf] %v1266
        %1299 = vst [vmem:[%s331 + $0x24] sm:$0xf] %v1267
        %1300 = vst [vmem:[%s331 + $0x28] sm:$0xf] %v1268
        %1301 = vst [vmem:[%s331 + $0x2c] sm:$0xf] %v1269
        %1302 = vst [vmem:[%s331 + $0x30] sm:$0xf] %v1270
        %1303 = vst [vmem:[%s331 + $0x34] sm:$0xf] %v1271
        %1304 = vst [vmem:[%s331 + $0x38] sm:$0xf] %v1272
        %1305 = vst [vmem:[%s331 + $0x3c] sm:$0xf] %v1273
        %s1306 = sand.u32 %s185, 1
        %s1307 = scalar_lea.sflag [#allocation4], %s1306
        %s1308 = sand.u32 %s185, 1
        %s1309 = smul.addr %s1308, 64
        %s1310 = scalar_lea.vmem [#allocation8], %s1309
        // Predicated region
        $region61: #{tpu_custom_call.1} parent=47 // pred_check
          %p1311 = pneg %p195
        $region62: #{tpu_custom_call.1} parent=47 // pred_check_branch
          %1313 = sbr.rel (%p1311) target = $region64
        $region63: #{tpu_custom_call.1} parent=47 // pred_region
          %s1314 = smul.u32 16, %s25
          %s1315 = ssub.s32 50, %s1314
          %p1316 = scmp.lt.s32.totalorder %s1315, 16
          %s1317 = scalar_select %p1316, %s1315, 16
          %s1318 = smul.u32 64, %s1317
          %s1320 = ssub.s32 1024, %s1318
          %1321 = vsyncadd %s1307, %s1320
          %p1322 = scmp.ne.s32.totalorder 0, %s1318
          %s1323 = smul.addr %s1314, 64
          %s1324 = scalar_lea.hbm %s7, %s1323
          %s1325 = smul.u32 4, %s1317
          %s1326 = sshll.u32 %s1310, 4
          %s1327 = int_to_ptr.vmem [resolvable:$true] %s1326
          %s1328 = sshll.u32 %s1325, 4
          %1332 = dma.vmem_to_hbm [thread:$0]  (%p1322), %s1327, %s1328, %s1324, %s1307, 64, 64, 4
        $region64: #{tpu_custom_call.1} parent=47 // pred_fallthru
          _
      $region48: #{tpu_custom_call.1} parent=5 // pred_fallthru
        _
      %p1333 = scmp.le.s32.totalorder 2, %s20
      // Predicated region
      $region65: #{tpu_custom_call.1} parent=5 // pred_check
        %p1334 = pneg %p1333
      $region66: #{tpu_custom_call.1} parent=5 // pred_check_branch
        %1336 = sbr.rel (%p1334) target = $region68
      $region67: #{tpu_custom_call.1} parent=5 // pred_region
        %s1337 = ssub.s32 %s20, 2
        // Predicated region
        $region69: #{tpu_custom_call.1} parent=67 // pred_check
          %p1338 = pneg %p201
        $region70: #{tpu_custom_call.1} parent=67 // pred_check_branch
          %1340 = sbr.rel (%p1338) target = $region72
        $region71: #{tpu_custom_call.1} parent=67 // pred_region
          %s1341 = sand.u32 %s186, 1
          %s1342 = scalar_lea.sflag [#allocation4], %s1341
          %s1343 = sand.u32 %s186, 1
          %s1344 = smul.addr %s1343, 64
          %s1345 = scalar_lea.vmem [#allocation8], %s1344
          %1346 = dma.done %s1342, 1024
        $region72: #{tpu_custom_call.1} parent=67 // pred_fallthru
          _
      $region68: #{tpu_custom_call.1} parent=5 // pred_fallthru
        _
    $region6: #{tpu_custom_call.1} parent=1 // loop_footer
      %s24 = sadd.s32 1, %s20
    $region7: #{tpu_custom_call.1} parent=1 // loop_footer_branch
      %19 = sbr.rel target = $region3
    $region8: #{tpu_custom_call.1} parent=1 // loop_exit
      _
    %1347 = vsyncpa [#allocation3], 1
    %s1348 = scalar_lea.sflag [#allocation3], 1
    %1349 = vsyncpa %s1348, 1
    %1350 = vsyncpa [#allocation6], 1
    %1351 = vsyncpa [#allocation4], 1
    %s1352 = scalar_lea.sflag [#allocation4], 1
    %1353 = vsyncpa %s1352, 1

</llo_original>
